<compile_context>
chip_gen: v6e
topology: v6e:2x2x1
jax: 0.10.0
libtpu: 0.0.40
codegen_flags: <defaults>
</compile_context>

<pallas_src>
import functools

import jax
import jax.numpy as jnp
from jax.experimental import pallas as pl
from jax.experimental.pallas import tpu as pltpu

_LANES = 128                 # lane width / minimum time-block granularity
_MAX_TB = 512                # rows-per-tile cap (multiple of 32 -> valid for any dtype pack)
_MAX_TILE_ELEMS = 1 << 20    # ~4 MiB of f32 compute per tile
_VMEM_LIMIT_BYTES = 48 << 20 # explicit scoped-VMEM limit (fits v7x's 64 MiB physical)


def _round_down(n: int, m: int) -> int:
    return (n // m) * m


def _pre_emphasis_kernel(x_ref, halo_ref, o_ref, *, coef):
    # x_ref:    (tb, tt)   current tile
    # halo_ref: (tb, 128)  lane block whose last column is global column j*tt - 1
    # o_ref:    (tb, tt)
    x = x_ref[...].astype(jnp.float32)

    # prev[:, t] = x[:, t-1] for t >= 1 (column 0 wraps within the tile; patched below).
    prev = pltpu.roll(x, shift=1, axis=1)
    o_ref[...] = (x - coef * prev).astype(o_ref.dtype)

    # Narrow column-0 patch:
    #   first time tile  -> reflect pad:  prev0 = x[:, 1]
    #   later time tiles -> halo column:  prev0 = x_global[:, j*tt - 1]
    j = pl.program_id(1)
    halo_col = halo_ref[:, _LANES - 1:_LANES].astype(jnp.float32)
    prev0 = jnp.where(j == 0, x[:, 1:2], halo_col)
    o_ref[:, 0:1] = (x[:, 0:1] - coef * prev0).astype(o_ref.dtype)


def pre_emphasis(x: jax.Array, coef: float = 0.97, *, tb=None, tt=None) -> jax.Array:
    assert x.ndim == 2, "The number of dimensions of input tensor must be 2!"
    B, T = x.shape
    assert T >= 2, "reflect padding needs at least 2 samples along time"

    # Only genuinely tiny time axes get padded (negligible cost); everything else
    # runs unpadded with masked partial edge blocks.
    if T < _LANES:
        xp = jnp.pad(x, ((0, 0), (0, _LANES - T)))
    else:
        xp = x
    T_eff = xp.shape[1]

    # Batch tile: full-dim block when it fits (no batch padding / rounding);
    # otherwise a pack-aligned 512-row tile (512 is a multiple of 8/16/32).
    if tb is None:
        tb = B if B <= _MAX_TB else _MAX_TB
    tb = min(tb, B)

    # Time tile: VMEM-byte budget, 128-aligned, never exceeding the lane-aligned
    # floor of the time extent (so no block ever exceeds the array dim).
    if tt is None:
        tt = max(_LANES, _round_down(_MAX_TILE_ELEMS // tb, _LANES))
    tt = min(tt, _round_down(T_eff, _LANES))
    tt = max(tt, _LANES)
    assert tt % _LANES == 0

    grid = (pl.cdiv(B, tb), pl.cdiv(T_eff, tt))
    halo_blocks_per_tile = tt // _LANES

    kernel = functools.partial(_pre_emphasis_kernel, coef=coef)
    out = pl.pallas_call(
        kernel,
        out_shape=jax.ShapeDtypeStruct((B, T_eff), x.dtype),
        grid=grid,
        in_specs=[
            # Current tile.
            pl.BlockSpec((tb, tt), lambda i, j: (i, j)),
            # Halo: 128-lane block ending right before this tile (clamped to
            # block 0 for j == 0, where it is unused).
            pl.BlockSpec(
                (tb, _LANES),
                lambda i, j: (i, jnp.maximum(j * halo_blocks_per_tile - 1, 0)),
            ),
        ],
        out_specs=pl.BlockSpec((tb, tt), lambda i, j: (i, j)),
        compiler_params=pltpu.CompilerParams(
            # Every (i, j) tile is independent (halo is its own input read), so
            # both axes can shard across v7x's two TensorCores.
            dimension_semantics=("parallel", "parallel"),
            vmem_limit_bytes=_VMEM_LIMIT_BYTES,
        ),
    )(xp, xp)

    return out if T_eff == T else out[:, :T]


def _pre_emphasis_ref(x: jax.Array, coef: float = 0.97) -> jax.Array:
    # Pure-JAX reference mirroring the PyTorch forward (reflect pad + conv1d).
    padded = jnp.concatenate([x[:, 1:2], x], axis=1)
    return padded[:, 1:] - coef * padded[:, :-1]


if __name__ == "__main__":
    coef = 0.97
    k1, k2, k3 = jax.random.split(jax.random.PRNGKey(0), 3)

    # Small 2-D (batch, time) input matching the module's forward.
    B, T = 2, 16
    x = jax.random.normal(k1, (B, T), dtype=jnp.float32)
    out = jax.block_until_ready(pre_emphasis(x, coef=coef))
    ref = _pre_emphasis_ref(x, coef=coef)
    assert out.shape == (B, T) and out.dtype == x.dtype
    assert jnp.allclose(out, ref, atol=1e-6, rtol=1e-6)

    # Multi-time-tile halo path + masked partial edge block (T not a multiple of tt),
    # with a full-dim (non-multiple-of-8) batch block and no padding anywhere.
    B2, T2 = 4, 520
    x2 = jax.random.normal(k2, (B2, T2), dtype=jnp.float32)
    out2 = jax.block_until_ready(pre_emphasis(x2, coef=coef, tt=128))
    ref2 = _pre_emphasis_ref(x2, coef=coef)
    assert out2.shape == (B2, T2) and out2.dtype == x2.dtype
    assert jnp.allclose(out2, ref2, atol=1e-6, rtol=1e-6)

    # bf16 input, odd batch handled as a full-dim sublane block, auto tiling.
    B3, T3 = 3, 384
    x3 = jax.random.normal(k3, (B3, T3), dtype=jnp.float32).astype(jnp.bfloat16)
    out3 = jax.block_until_ready(pre_emphasis(x3, coef=coef))
    ref3 = _pre_emphasis_ref(x3.astype(jnp.float32), coef=coef)
    assert out3.shape == (B3, T3) and out3.dtype == jnp.bfloat16
    assert jnp.allclose(out3.astype(jnp.float32), ref3, atol=5e-2, rtol=5e-2)

    print("KERNEL_OK")
</pallas_src>

<mosaic_0001>
module attributes {stable_mosaic.version = 11 : i64} {
  func.func @_pre_emphasis_kernel(%arg0: i32, %arg1: i32, %arg2: memref<2x128xf32, #tpu.memory_space<vmem>>, %arg3: memref<2x128xf32, #tpu.memory_space<vmem>>, %arg4: memref<2x128xf32, #tpu.memory_space<vmem>>) attributes {dimension_semantics = [#tpu.dimension_semantics<parallel>, #tpu.dimension_semantics<parallel>], iteration_bounds = array<i64: 1, 1>, scalar_prefetch = 0 : i64, scratch_operands = 0 : i64, tpu.core_type = #tpu.core_type<tc>, window_params = [{transform_indices = @transform_0, window_bounds = array<i64: 2, 128>}, {transform_indices = @transform_1, window_bounds = array<i64: 2, 128>}, {transform_indices = @transform_2, window_bounds = array<i64: 2, 128>}]} {
    %c0 = arith.constant 0 : index
    %c0_0 = arith.constant 0 : index
    %0 = vector.load %arg2[%c0, %c0_0] : memref<2x128xf32, #tpu.memory_space<vmem>>, vector<2x128xf32>
    %c1_i32 = arith.constant 1 : i32
    %1 = tpu.dynamic_rotate %0 by %c1_i32 dim 1 : vector<2x128xf32>, i32 -> vector<2x128xf32>
    %cst = arith.constant 9.700000e-01 : f32
    %2 = vector.broadcast %cst : f32 to vector<2x128xf32>
    %3 = arith.mulf %2, %1 : vector<2x128xf32>
    %4 = arith.subf %0, %3 : vector<2x128xf32>
    %c0_1 = arith.constant 0 : index
    %c0_2 = arith.constant 0 : index
    %5 = vector.load %arg4[%c0_1, %c0_2] : memref<2x128xf32, #tpu.memory_space<vmem>>, vector<2x128xf32>
    tpu.vector_store %arg4[%c0_1, %c0_2], %4 {strides = array<i32>} : memref<2x128xf32, #tpu.memory_space<vmem>>, vector<2x128xf32>,
    %c0_3 = arith.constant 0 : index
    %c127 = arith.constant 127 : index
    %6 = vector.load %arg3[%c0_3, %c127] : memref<2x128xf32, #tpu.memory_space<vmem>>, vector<2x1xf32>
    %c0_i32 = arith.constant 0 : i32
    %7 = arith.cmpi eq, %arg1, %c0_i32 : i32
    %8 = vector.extract_strided_slice %0 {offsets = [0, 1], sizes = [2, 1], strides = [1, 1]} : vector<2x128xf32> to vector<2x1xf32>
    %9 = arith.select %7, %8, %6 : vector<2x1xf32>
    %10 = vector.extract_strided_slice %0 {offsets = [0, 0], sizes = [2, 1], strides = [1, 1]} : vector<2x128xf32> to vector<2x1xf32>
    %cst_4 = arith.constant 9.700000e-01 : f32
    %11 = vector.broadcast %cst_4 : f32 to vector<2x1xf32>
    %12 = arith.mulf %11, %9 : vector<2x1xf32>
    %13 = arith.subf %10, %12 : vector<2x1xf32>
    %c0_5 = arith.constant 0 : index
    %c0_6 = arith.constant 0 : index
    %14 = vector.load %arg4[%c0_5, %c0_6] : memref<2x128xf32, #tpu.memory_space<vmem>>, vector<2x1xf32>
    tpu.vector_store %arg4[%c0_5, %c0_6], %13 {strides = array<i32>} : memref<2x128xf32, #tpu.memory_space<vmem>>, vector<2x1xf32>,
    return
  }
  func.func @transform_0(%arg0: i32, %arg1: i32) -> (i32, i32) {
    %c0_i32 = arith.constant 0 : i32
    return %arg0, %arg1 : i32, i32
  }
  func.func @transform_1(%arg0: i32, %arg1: i32) -> (i32, i32) {
    %c1_i32 = arith.constant 1 : i32
    %0 = arith.muli %arg1, %c1_i32 : i32
    %c1_i32_0 = arith.constant 1 : i32
    %1 = arith.subi %0, %c1_i32_0 : i32
    %c0_i32 = arith.constant 0 : i32
    %2 = arith.maxsi %1, %c0_i32 : i32
    %c0_i32_1 = arith.constant 0 : i32
    return %arg0, %2 : i32, i32
  }
  func.func @transform_2(%arg0: i32, %arg1: i32) -> (i32, i32) {
    %c0_i32 = arith.constant 0 : i32
    return %arg0, %arg1 : i32, i32
  }
}

</mosaic_0001>

<llo_original>
// kernel: tpu_custom_call.1
$region0: #{tpu_custom_call.1}
  #allocation0 [shape = 'u32[]', space=smem, size = 0x4, offset = 0x4, fixed_abs, tag = 'smem constant byte address 0x4 - core index']
  #allocation1 [shape = 'u32[144,128]{1,0:T(1,128)}', space=vmem, size = 0x12000, scoped, tag = 'internal scratch']
  %s0 = inlined_call_operand.hbm [shape: f32[2,128], index: 0, kind: input, shape index: {}]
  %s1 = inlined_call_operand.hbm [shape: f32[2,128], index: 1, kind: input, shape index: {}]
  %s2 = inlined_call_operand.hbm [shape: f32[2,128], index: 2, kind: output, shape index: {}]
  %s3 = sld [smem:[#allocation0]]
  $region26: #{tpu_custom_call.1} parent=0
    _
  %s5 = ssub.s32 1, %s3
  %s6 = scalar_select 0, %s5, %s3
  $region1: #{tpu_custom_call.1} parent=0
    #allocation2 [shape = 'u8[1024]{0}', space=vmem, size = 0x400, scoped, tag = 'input window, operand 0, single buffered']
    #allocation3 [shape = 's32[1]{0}', space=sflag, size = 0x4, scoped, tag = 'scoped memory for tpu_custom_call.1']
    #allocation4 [shape = 's32[1]{0}', space=sflag, size = 0x4, scoped, tag = 'scoped memory for tpu_custom_call.1']
    #allocation5 [shape = 'u8[1024]{0}', space=vmem, size = 0x400, scoped, tag = 'input window, operand 1, single buffered']
    #allocation6 [shape = 's32[1]{0}', space=sflag, size = 0x4, scoped, tag = 'scoped memory for tpu_custom_call.1']
    #allocation7 [shape = 'u8[1024]{0}', space=vmem, size = 0x400, scoped, tag = 'output window, operand 0, single buffered']
    %7 = vsyncpa [#allocation3], 0
    %8 = vsyncpa [#allocation6], 0
    %9 = vsyncpa [#allocation4], 0
    // Predicated region
    $region2: #{tpu_custom_call.1} parent=1 // pred_check
      _
    $region3: #{tpu_custom_call.1} parent=1 // pred_check_branch
      %11 = sbr.rel (0) target = $region5
    $region4: #{tpu_custom_call.1} parent=1 // pred_region
      %s13 = ssub.s32 32, 32
      %14 = vsyncadd [#allocation3], %s13
      %s16 = sshll.u32 [#allocation2], 4
      %s17 = int_to_ptr.vmem [resolvable:$true] %s16
      %19 = dma.hbm_to_vmem [thread:$0]  %s0, 32, %s17, [#allocation3]
    $region5: #{tpu_custom_call.1} parent=1 // pred_fallthru
      _
    // Predicated region
    $region6: #{tpu_custom_call.1} parent=1 // pred_check
      _
    $region7: #{tpu_custom_call.1} parent=1 // pred_check_branch
      %21 = sbr.rel (0) target = $region9
    $region8: #{tpu_custom_call.1} parent=1 // pred_region
      %s22 = ssub.s32 0, 1
      %p23 = scmp.gt.s32.totalorder %s22, 0
      %s24 = scalar_select %p23, %s22, 0
      %s26 = ssub.s32 32, 32
      %27 = vsyncadd [#allocation6], %s26
      %s28 = smul.addr %s24, 32
      %s29 = scalar_lea.hbm %s1, %s28
      %s31 = sshll.u32 [#allocation5], 4
      %s32 = int_to_ptr.vmem [resolvable:$true] %s31
      %34 = dma.hbm_to_vmem [thread:$0]  %s29, 32, %s32, [#allocation6]
    $region9: #{tpu_custom_call.1} parent=1 // pred_fallthru
      _
    // Predicated region
    $region10: #{tpu_custom_call.1} parent=1 // pred_check
      _
    $region11: #{tpu_custom_call.1} parent=1 // pred_check_branch
      %36 = sbr.rel (0) target = $region13
    $region12: #{tpu_custom_call.1} parent=1 // pred_region
      %37 = dma.done [#allocation3], 32
    $region13: #{tpu_custom_call.1} parent=1 // pred_fallthru
      _
    // Predicated region
    $region14: #{tpu_custom_call.1} parent=1 // pred_check
      _
    $region15: #{tpu_custom_call.1} parent=1 // pred_check_branch
      %39 = sbr.rel (0) target = $region17
    $region16: #{tpu_custom_call.1} parent=1 // pred_region
      %40 = dma.done [#allocation6], 32
    $region17: #{tpu_custom_call.1} parent=1 // pred_fallthru
      _
    %s41 = ssub.s32 0, 1
    %p42 = scmp.gt.s32.totalorder %s41, 0
    %s43 = scalar_select %p42, %s41, 0
    %v44 = vld [vmem:[#allocation2] sm:$0x3]
    %45 = vrot.lane.b32.xlu0 %v44, 1
    %v46 = vpop.permute.xlu0 %45
    %v47 = vmul.f32 %v46, 0.97
    %v48 = vsub.f32 %v44, %v47
    %49 = vst [vmem:[#allocation7] sm:$0x3] %v48
    %v50 = vld [vmem:[#allocation5] sm:$0x3]
    %p51 = scmp.eq.s32.totalorder 0, 0
    %s52 = scalar_select %p51, 1, 0
    %v53 = vstv %s52
    %vm54 = vcmp.eq.s32.totalorder %v53, 1
    %56 = vrot.lane.b32.xlu0 %v50, 2
    %v57 = vpop.permute.xlu0 %56
    %v59 = vsel %vm54, %v44, %v57
    %v60 = vmul.f32 %v59, 0.97
    %62 = vrot.lane.b32.xlu0 %v60, 127
    %v63 = vpop.permute.xlu0 %62
    %v65 = vsub.f32 %v44, %v63
    %vm66 = vcmask 1024
    %67 = vst.msk [vmem:[#allocation7] sm:$0x3] %vm66, %v65
    // Predicated region
    $region18: #{tpu_custom_call.1} parent=1 // pred_check
      _
    $region19: #{tpu_custom_call.1} parent=1 // pred_check_branch
      %69 = sbr.rel (0) target = $region21
    $region20: #{tpu_custom_call.1} parent=1 // pred_region
      %s71 = ssub.s32 32, 32
      %72 = vsyncadd [#allocation4], %s71
      %s74 = sshll.u32 [#allocation7], 4
      %s75 = int_to_ptr.vmem [resolvable:$true] %s74
      %77 = dma.vmem_to_hbm [thread:$0]  %s75, 32, %s2, [#allocation4]
    $region21: #{tpu_custom_call.1} parent=1 // pred_fallthru
      _
    // Predicated region
    $region22: #{tpu_custom_call.1} parent=1 // pred_check
      _
    $region23: #{tpu_custom_call.1} parent=1 // pred_check_branch
      %79 = sbr.rel (0) target = $region25
    $region24: #{tpu_custom_call.1} parent=1 // pred_region
      %80 = dma.done [#allocation4], 32
    $region25: #{tpu_custom_call.1} parent=1 // pred_fallthru
      _
    %81 = vsyncpa [#allocation3], 1
    %82 = vsyncpa [#allocation6], 1
    %83 = vsyncpa [#allocation4], 1

</llo_original>
